<compile_context>
chip_gen: v7x
topology: tpu7x:2x2x1
jax: 0.10.0
libtpu: 0.0.40
codegen_flags: <defaults>
</compile_context>

<pallas_src>
import jax
import jax.numpy as jnp
from jax import lax
from jax.experimental import pallas as pl
from jax.experimental.pallas import tpu as pltpu


def _critic_kernel(x_ref, a_ref, w11_ref, w12_ref, b1_ref, w2_ref, b2_ref,
                   w3_ref, b3_ref, out_ref):
    bf16 = jnp.bfloat16

    # Layer 1: fc11(x) + fc12(a) + (b11 + b12), ReLU.  bf16 operands, f32 acc.
    h1 = (jnp.dot(x_ref[...].astype(bf16), w11_ref[...],
                  preferred_element_type=jnp.float32)
          + jnp.dot(a_ref[...].astype(bf16), w12_ref[...],
                    preferred_element_type=jnp.float32)
          + b1_ref[...])
    h1 = jnp.maximum(h1, 0.0)

    # Layer 2: fc2 + ReLU.
    h2 = jnp.dot(h1.astype(bf16), w2_ref[...],
                 preferred_element_type=jnp.float32) + b2_ref[...]
    h2 = jnp.maximum(h2, 0.0)

    # fc3 (output width 1): contract hidden2 of the w3 row against hidden2 of
    # h2 (i.e. w3_row @ h2^T), producing a lane-dense (1, tile) row directly —
    # no (tile, 1) masked store and no post-reduce relayout.  MXU is idle here.
    q = lax.dot_general(w3_ref[...], h2,
                        dimension_numbers=(((1,), (1,)), ((), ())),
                        preferred_element_type=jnp.float32)
    out_ref[...] = (q + b3_ref[...]).astype(out_ref.dtype)


def _round_up(n, m):
    return ((n + m - 1) // m) * m


def _batch_tiling(batch, cap=2048, align=128):
    """128-aligned row tile, <= cap rows, padding waste bounded by one tile,
    and >= 2 grid steps when batch > 128 (so v7x can use both TensorCores)."""
    num_tiles = max(pl.cdiv(batch, cap), 2 if batch > align else 1)
    tile = _round_up(pl.cdiv(batch, num_tiles), align)
    num_tiles = pl.cdiv(batch, tile)
    return tile, num_tiles


def prepare_critic_params(params):
    """One-time (per weight update) parameter prep, hoisted off the hot path.

    - layer-1 bias fusion: b1 = b11 + b12
    - matmul weights cast to bfloat16 (MXU-native rate)
    - w3 stored as a (1, hidden2) f32 row, b3 as (1, 1) f32
    """
    w11, b11, w12, b12, w2, b2, w3, b3 = params
    return (w11.astype(jnp.bfloat16),
            w12.astype(jnp.bfloat16),
            (b11 + b12).astype(jnp.float32),
            w2.astype(jnp.bfloat16),
            b2.astype(jnp.float32),
            w3.T.astype(jnp.float32),          # (1, hidden2)
            b3.reshape(1, 1).astype(jnp.float32))


@jax.jit
def critic_forward(x, a, prepared):
    """Fused Critic forward pass via one pallas_call with a batch grid."""
    w11, w12, b1, w2, b2, w3_row, b3 = prepared

    batch, ns = x.shape
    na = a.shape[1]
    hidden1 = w11.shape[1]
    hidden2 = w2.shape[1]

    tile, num_tiles = _batch_tiling(batch)
    batch_p = tile * num_tiles
    if batch_p != batch:
        x = jnp.pad(x, ((0, batch_p - batch), (0, 0)))
        a = jnp.pad(a, ((0, batch_p - batch), (0, 0)))

    row = lambda i: (i, 0)     # activation / output tiles walk the batch axis
    const = lambda i: (0, 0)   # params: fetched once, stay VMEM-resident

    out_rows = pl.pallas_call(
        _critic_kernel,
        out_shape=jax.ShapeDtypeStruct((num_tiles, tile), jnp.float32),
        grid=(num_tiles,),
        in_specs=[
            pl.BlockSpec((tile, ns), row),           # x tile
            pl.BlockSpec((tile, na), row),           # a tile
            pl.BlockSpec((ns, hidden1), const),      # w11 (bf16)
            pl.BlockSpec((na, hidden1), const),      # w12 (bf16)
            pl.BlockSpec((1, hidden1), const),       # b1 = b11 + b12 (f32)
            pl.BlockSpec((hidden1, hidden2), const), # w2 (bf16)
            pl.BlockSpec((1, hidden2), const),       # b2 (f32)
            pl.BlockSpec((1, hidden2), const),       # w3 as a row (f32)
            pl.BlockSpec((1, 1), const),             # b3 (f32)
        ],
        # Lane-dense output: one (1, tile) row per grid step.
        out_specs=pl.BlockSpec((1, tile), lambda i: (i, 0)),
        compiler_params=pltpu.CompilerParams(
            # Batch rows are independent: shard grid steps across both
            # TensorCores on v7x; harmless on single-TC v5e/v6e.
            dimension_semantics=("parallel",),
        ),
    )(x, a, w11, w12, b1, w2, b2, w3_row, b3)

    # (num_tiles, tile) rows are contiguous batch indices -> (batch, 1).
    return out_rows.reshape(batch_p, 1)[:batch]


def init_critic_params(key, nb_states, nb_actions, hidden1, hidden2):
    """PyTorch-Linear-style init (uniform +-1/sqrt(fan_in)).

    Weights are returned transposed to (in, out); biases are (1, out).
    """
    keys = jax.random.split(key, 8)

    def linear(wkey, bkey, fan_in, fan_out):
        bound = 1.0 / jnp.sqrt(jnp.float32(fan_in))
        w = jax.random.uniform(wkey, (fan_in, fan_out), jnp.float32, -bound, bound)
        b = jax.random.uniform(bkey, (1, fan_out), jnp.float32, -bound, bound)
        return w, b

    w11, b11 = linear(keys[0], keys[1], nb_states, hidden1)
    w12, b12 = linear(keys[2], keys[3], nb_actions, hidden1)
    w2, b2 = linear(keys[4], keys[5], hidden1, hidden2)
    w3, b3 = linear(keys[6], keys[7], hidden2, 1)
    return (w11, b11, w12, b12, w2, b2, w3, b3)


def critic_reference(x, a, params):
    """Plain-JAX f32 reference mirroring the PyTorch module exactly."""
    w11, b11, w12, b12, w2, b2, w3, b3 = params
    out = (x @ w11 + b11) + (a @ w12 + b12)
    out = jnp.maximum(out, 0.0)
    out = out @ w2 + b2
    out = jnp.maximum(out, 0.0)
    out = out @ w3 + b3
    return out


if __name__ == "__main__":
    # Small shapes consistent with the module's forward:
    #   x: (batch, nb_states), a: (batch, nb_actions)
    batch, nb_states, nb_actions = 8, 16, 4
    hidden1, hidden2 = 64, 32

    key = jax.random.PRNGKey(0)
    kx, ka, kp = jax.random.split(key, 3)
    x = jax.random.normal(kx, (batch, nb_states), jnp.float32)
    a = jax.random.normal(ka, (batch, nb_actions), jnp.float32)
    params = init_critic_params(kp, nb_states, nb_actions, hidden1, hidden2)
    prepared = prepare_critic_params(params)   # hoisted, once per weight update

    out = jax.block_until_ready(critic_forward(x, a, prepared))

    ref = critic_reference(x, a, params)
    assert out.shape == (batch, 1), out.shape
    # bf16 matmul operands -> looser agreement with the fp32 reference.
    assert jnp.allclose(out, ref, atol=5e-2, rtol=5e-2), (out, ref)

    print("KERNEL_OK")
</pallas_src>

<mosaic_0001>
module attributes {stable_mosaic.version = 11 : i64} {
  func.func @_critic_kernel(%arg0: i32, %arg1: memref<128x16xf32, #tpu.memory_space<vmem>>, %arg2: memref<128x4xf32, #tpu.memory_space<vmem>>, %arg3: memref<16x64xbf16, #tpu.memory_space<vmem>>, %arg4: memref<4x64xbf16, #tpu.memory_space<vmem>>, %arg5: memref<1x64xf32, #tpu.memory_space<vmem>>, %arg6: memref<64x32xbf16, #tpu.memory_space<vmem>>, %arg7: memref<1x32xf32, #tpu.memory_space<vmem>>, %arg8: memref<1x32xf32, #tpu.memory_space<vmem>>, %arg9: memref<1x1xf32, #tpu.memory_space<vmem>>, %arg10: memref<1x128xf32, #tpu.memory_space<vmem>>) attributes {dimension_semantics = [#tpu.dimension_semantics<parallel>], iteration_bounds = array<i64: 1>, scalar_prefetch = 0 : i64, scratch_operands = 0 : i64, tpu.core_type = #tpu.core_type<tc>, window_params = [{transform_indices = @transform_0, window_bounds = array<i64: 128, 16>}, {transform_indices = @transform_1, window_bounds = array<i64: 128, 4>}, {pipeline_mode = #tpu.pipeline_mode<synchronous>, transform_indices = @transform_2, window_bounds = array<i64: 16, 64>}, {pipeline_mode = #tpu.pipeline_mode<synchronous>, transform_indices = @transform_3, window_bounds = array<i64: 4, 64>}, {pipeline_mode = #tpu.pipeline_mode<synchronous>, transform_indices = @transform_4, window_bounds = array<i64: 1, 64>}, {pipeline_mode = #tpu.pipeline_mode<synchronous>, transform_indices = @transform_5, window_bounds = array<i64: 64, 32>}, {pipeline_mode = #tpu.pipeline_mode<synchronous>, transform_indices = @transform_6, window_bounds = array<i64: 1, 32>}, {pipeline_mode = #tpu.pipeline_mode<synchronous>, transform_indices = @transform_7, window_bounds = array<i64: 1, 32>}, {pipeline_mode = #tpu.pipeline_mode<synchronous>, transform_indices = @transform_8, window_bounds = array<i64: 1, 1>}, {transform_indices = @transform_9, window_bounds = array<i64: 1, 128>}]} {
    %c0 = arith.constant 0 : index
    %c0_0 = arith.constant 0 : index
    %0 = vector.load %arg1[%c0, %c0_0] : memref<128x16xf32, #tpu.memory_space<vmem>>, vector<128x16xf32>
    %1 = arith.truncf %0 : vector<128x16xf32> to vector<128x16xbf16>
    %c0_1 = arith.constant 0 : index
    %c0_2 = arith.constant 0 : index
    %2 = vector.load %arg3[%c0_1, %c0_2] : memref<16x64xbf16, #tpu.memory_space<vmem>>, vector<16x64xbf16>
    %cst = arith.constant dense<0.000000e+00> : vector<128x64xf32>
    %3 = tpu.matmul %1, %2, %cst {dimension_numbers = #tpu.dot_dimension_numbers<[1], [0], [0], [1], [0, 0, 1, 1], [], []>} : vector<128x16xbf16>, vector<16x64xbf16>, vector<128x64xf32> -> vector<128x64xf32>
    %c0_3 = arith.constant 0 : index
    %c0_4 = arith.constant 0 : index
    %4 = vector.load %arg2[%c0_3, %c0_4] : memref<128x4xf32, #tpu.memory_space<vmem>>, vector<128x4xf32>
    %5 = arith.truncf %4 : vector<128x4xf32> to vector<128x4xbf16>
    %c0_5 = arith.constant 0 : index
    %c0_6 = arith.constant 0 : index
    %6 = vector.load %arg4[%c0_5, %c0_6] : memref<4x64xbf16, #tpu.memory_space<vmem>>, vector<4x64xbf16>
    %cst_7 = arith.constant dense<0.000000e+00> : vector<128x64xf32>
    %7 = tpu.matmul %5, %6, %cst_7 {dimension_numbers = #tpu.dot_dimension_numbers<[1], [0], [0], [1], [0, 0, 1, 1], [], []>} : vector<128x4xbf16>, vector<4x64xbf16>, vector<128x64xf32> -> vector<128x64xf32>
    %8 = arith.addf %3, %7 : vector<128x64xf32>
    %c0_8 = arith.constant 0 : index
    %c0_9 = arith.constant 0 : index
    %9 = vector.load %arg5[%c0_8, %c0_9] : memref<1x64xf32, #tpu.memory_space<vmem>>, vector<1x64xf32>
    %10 = vector.broadcast %9 : vector<1x64xf32> to vector<128x64xf32>
    %11 = arith.addf %8, %10 : vector<128x64xf32>
    %cst_10 = arith.constant 0.000000e+00 : f32
    %12 = vector.broadcast %cst_10 : f32 to vector<128x64xf32>
    %13 = arith.maximumf %11, %12 : vector<128x64xf32>
    %14 = arith.truncf %13 : vector<128x64xf32> to vector<128x64xbf16>
    %c0_11 = arith.constant 0 : index
    %c0_12 = arith.constant 0 : index
    %15 = vector.load %arg6[%c0_11, %c0_12] : memref<64x32xbf16, #tpu.memory_space<vmem>>, vector<64x32xbf16>
    %cst_13 = arith.constant dense<0.000000e+00> : vector<128x32xf32>
    %16 = tpu.matmul %14, %15, %cst_13 {dimension_numbers = #tpu.dot_dimension_numbers<[1], [0], [0], [1], [0, 0, 1, 1], [], []>} : vector<128x64xbf16>, vector<64x32xbf16>, vector<128x32xf32> -> vector<128x32xf32>
    %c0_14 = arith.constant 0 : index
    %c0_15 = arith.constant 0 : index
    %17 = vector.load %arg7[%c0_14, %c0_15] : memref<1x32xf32, #tpu.memory_space<vmem>>, vector<1x32xf32>
    %18 = vector.broadcast %17 : vector<1x32xf32> to vector<128x32xf32>
    %19 = arith.addf %16, %18 : vector<128x32xf32>
    %cst_16 = arith.constant 0.000000e+00 : f32
    %20 = vector.broadcast %cst_16 : f32 to vector<128x32xf32>
    %21 = arith.maximumf %19, %20 : vector<128x32xf32>
    %c0_17 = arith.constant 0 : index
    %c0_18 = arith.constant 0 : index
    %22 = vector.load %arg8[%c0_17, %c0_18] : memref<1x32xf32, #tpu.memory_space<vmem>>, vector<1x32xf32>
    %cst_19 = arith.constant dense<0.000000e+00> : vector<1x128xf32>
    %23 = tpu.matmul %22, %21, %cst_19 {dimension_numbers = #tpu.dot_dimension_numbers<[1], [1], [0], [0], [0, 0, 1, 0], [], []>} : vector<1x32xf32>, vector<128x32xf32>, vector<1x128xf32> -> vector<1x128xf32>
    %c0_20 = arith.constant 0 : index
    %c0_21 = arith.constant 0 : index
    %24 = vector.load %arg9[%c0_20, %c0_21] : memref<1x1xf32, #tpu.memory_space<vmem>>, vector<1x1xf32>
    %25 = vector.broadcast %24 : vector<1x1xf32> to vector<1x128xf32>
    %26 = arith.addf %23, %25 : vector<1x128xf32>
    %c0_22 = arith.constant 0 : index
    %c0_23 = arith.constant 0 : index
    %27 = vector.load %arg10[%c0_22, %c0_23] : memref<1x128xf32, #tpu.memory_space<vmem>>, vector<1x128xf32>
    tpu.vector_store %arg10[%c0_22, %c0_23], %26 {strides = array<i32>} : memref<1x128xf32, #tpu.memory_space<vmem>>, vector<1x128xf32>,
    return
  }
  func.func @transform_0(%arg0: i32) -> (i32, i32) {
    %c0_i32 = arith.constant 0 : i32
    %c0_i32_0 = arith.constant 0 : i32
    return %arg0, %c0_i32 : i32, i32
  }
  func.func @transform_1(%arg0: i32) -> (i32, i32) {
    %c0_i32 = arith.constant 0 : i32
    %c0_i32_0 = arith.constant 0 : i32
    return %arg0, %c0_i32 : i32, i32
  }
  func.func @transform_2(%arg0: i32) -> (i32, i32) {
    %c0_i32 = arith.constant 0 : i32
    %c0_i32_0 = arith.constant 0 : i32
    %c0_i32_1 = arith.constant 0 : i32
    return %c0_i32, %c0_i32_0 : i32, i32
  }
  func.func @transform_3(%arg0: i32) -> (i32, i32) {
    %c0_i32 = arith.constant 0 : i32
    %c0_i32_0 = arith.constant 0 : i32
    %c0_i32_1 = arith.constant 0 : i32
    return %c0_i32, %c0_i32_0 : i32, i32
  }
  func.func @transform_4(%arg0: i32) -> (i32, i32) {
    %c0_i32 = arith.constant 0 : i32
    %c0_i32_0 = arith.constant 0 : i32
    %c0_i32_1 = arith.constant 0 : i32
    return %c0_i32, %c0_i32_0 : i32, i32
  }
  func.func @transform_5(%arg0: i32) -> (i32, i32) {
    %c0_i32 = arith.constant 0 : i32
    %c0_i32_0 = arith.constant 0 : i32
    %c0_i32_1 = arith.constant 0 : i32
    return %c0_i32, %c0_i32_0 : i32, i32
  }
  func.func @transform_6(%arg0: i32) -> (i32, i32) {
    %c0_i32 = arith.constant 0 : i32
    %c0_i32_0 = arith.constant 0 : i32
    %c0_i32_1 = arith.constant 0 : i32
    return %c0_i32, %c0_i32_0 : i32, i32
  }
  func.func @transform_7(%arg0: i32) -> (i32, i32) {
    %c0_i32 = arith.constant 0 : i32
    %c0_i32_0 = arith.constant 0 : i32
    %c0_i32_1 = arith.constant 0 : i32
    return %c0_i32, %c0_i32_0 : i32, i32
  }
  func.func @transform_8(%arg0: i32) -> (i32, i32) {
    %c0_i32 = arith.constant 0 : i32
    %c0_i32_0 = arith.constant 0 : i32
    %c0_i32_1 = arith.constant 0 : i32
    return %c0_i32, %c0_i32_0 : i32, i32
  }
  func.func @transform_9(%arg0: i32) -> (i32, i32) {
    %c0_i32 = arith.constant 0 : i32
    %c0_i32_0 = arith.constant 0 : i32
    return %arg0, %c0_i32 : i32, i32
  }
}

</mosaic_0001>

<llo_original>
// kernel: critic_forward.1
$region0: #{critic_forward.1}
  #allocation0 [shape = 'u32[]', space=smem, size = 0x4, offset = 0x4, fixed_abs, tag = 'smem constant byte address 0x4 - core index']
  #allocation1 [shape = 'u32[144,128]{1,0:T(1,128)}', space=vmem, size = 0x12000, scoped, tag = 'internal scratch']
  #allocation2 [shape = 'f32[1,1]{1,0:T(1,128)S(1)}', space=vmem, size = 0x200, scoped, tag = 'scoped memory for critic_forward.1']
  %s0 = inlined_call_operand.vmem [shape: f32[128,16], index: 0, kind: input, shape index: {}]
  %s1 = inlined_call_operand.vmem [shape: f32[128,4], index: 1, kind: input, shape index: {}]
  %s2 = inlined_call_operand.vmem [shape: bf16[16,64], index: 2, kind: input, shape index: {}]
  %s3 = inlined_call_operand.vmem [shape: bf16[4,64], index: 3, kind: input, shape index: {}]
  %s4 = inlined_call_operand.vmem [shape: f32[1,64], index: 4, kind: input, shape index: {}]
  %s5 = inlined_call_operand.vmem [shape: bf16[64,32], index: 5, kind: input, shape index: {}]
  %s6 = inlined_call_operand.vmem [shape: f32[1,32], index: 6, kind: input, shape index: {}]
  %s7 = inlined_call_operand.vmem [shape: f32[1,32], index: 7, kind: input, shape index: {}]
  %s8 = inlined_call_operand.<no memory space> [shape: f32[1,1], index: 8, kind: input, shape index: {}]
  %s9 = inlined_call_operand.vmem [shape: f32[1,128], index: 9, kind: output, shape index: {}]
  %s10 = sld [smem:[#allocation0]]
  $region46: #{critic_forward.1} parent=0
    _
  %s12 = ssub.s32 1, %s10
  %s13 = scalar_select 0, %s12, %s10
  %v14 = vstv %s8
  %15 = vst [vmem:[#allocation2] sm:$0x1] %v14
  // Predicated region
  $region2: #{critic_forward.1} parent=0 // pred_check
    _
  $region3: #{critic_forward.1} parent=0 // pred_check_branch
    %17 = sbr.rel (0) target = $region5
  $region4: #{critic_forward.1} parent=0 // pred_region
    _
  $region5: #{critic_forward.1} parent=0 // pred_fallthru
    _
  // Predicated region
  $region6: #{critic_forward.1} parent=0 // pred_check
    _
  $region7: #{critic_forward.1} parent=0 // pred_check_branch
    %19 = sbr.rel (0) target = $region9
  $region8: #{critic_forward.1} parent=0 // pred_region
    _
  $region9: #{critic_forward.1} parent=0 // pred_fallthru
    _
  // Predicated region
  $region10: #{critic_forward.1} parent=0 // pred_check
    _
  $region11: #{critic_forward.1} parent=0 // pred_check_branch
    %21 = sbr.rel (0) target = $region13
  $region12: #{critic_forward.1} parent=0 // pred_region
    _
  $region13: #{critic_forward.1} parent=0 // pred_fallthru
    _
  // Predicated region
  $region14: #{critic_forward.1} parent=0 // pred_check
    _
  $region15: #{critic_forward.1} parent=0 // pred_check_branch
    %23 = sbr.rel (0) target = $region17
  $region16: #{critic_forward.1} parent=0 // pred_region
    _
  $region17: #{critic_forward.1} parent=0 // pred_fallthru
    _
  // Predicated region
  $region18: #{critic_forward.1} parent=0 // pred_check
    _
  $region19: #{critic_forward.1} parent=0 // pred_check_branch
    %25 = sbr.rel (0) target = $region21
  $region20: #{critic_forward.1} parent=0 // pred_region
    _
  $region21: #{critic_forward.1} parent=0 // pred_fallthru
    _
  // Predicated region
  $region22: #{critic_forward.1} parent=0 // pred_check
    _
  $region23: #{critic_forward.1} parent=0 // pred_check_branch
    %27 = sbr.rel (0) target = $region25
  $region24: #{critic_forward.1} parent=0 // pred_region
    _
  $region25: #{critic_forward.1} parent=0 // pred_fallthru
    _
  // Predicated region
  $region26: #{critic_forward.1} parent=0 // pred_check
    _
  $region27: #{critic_forward.1} parent=0 // pred_check_branch
    %29 = sbr.rel (0) target = $region29
  $region28: #{critic_forward.1} parent=0 // pred_region
    _
  $region29: #{critic_forward.1} parent=0 // pred_fallthru
    _
  // Predicated region
  $region30: #{critic_forward.1} parent=0 // pred_check
    _
  $region31: #{critic_forward.1} parent=0 // pred_check_branch
    %31 = sbr.rel (0) target = $region33
  $region32: #{critic_forward.1} parent=0 // pred_region
    _
  $region33: #{critic_forward.1} parent=0 // pred_fallthru
    _
  // Predicated region
  $region34: #{critic_forward.1} parent=0 // pred_check
    _
  $region35: #{critic_forward.1} parent=0 // pred_check_branch
    %33 = sbr.rel (0) target = $region37
  $region36: #{critic_forward.1} parent=0 // pred_region
    _
  $region37: #{critic_forward.1} parent=0 // pred_fallthru
    _
  %v35 = vld [vmem:[%s0] sm:$0xff]
  %v36 = vld [vmem:[%s0 + $0x8] sm:$0xff]
  %v37 = vld [vmem:[%s0 + $0x10] sm:$0xff]
  %v38 = vld [vmem:[%s0 + $0x18] sm:$0xff]
  %v39 = vld [vmem:[%s0 + $0x20] sm:$0xff]
  %v40 = vld [vmem:[%s0 + $0x28] sm:$0xff]
  %v41 = vld [vmem:[%s0 + $0x30] sm:$0xff]
  %v42 = vld [vmem:[%s0 + $0x38] sm:$0xff]
  %v43 = vld [vmem:[%s0 + $0x40] sm:$0xff]
  %v44 = vld [vmem:[%s0 + $0x48] sm:$0xff]
  %v45 = vld [vmem:[%s0 + $0x50] sm:$0xff]
  %v46 = vld [vmem:[%s0 + $0x58] sm:$0xff]
  %v47 = vld [vmem:[%s0 + $0x60] sm:$0xff]
  %v48 = vld [vmem:[%s0 + $0x68] sm:$0xff]
  %v49 = vld [vmem:[%s0 + $0x70] sm:$0xff]
  %v50 = vld [vmem:[%s0 + $0x78] sm:$0xff]
  %v51 = vpack.c.bf16 %v36, %v35
  %v52 = vpack.c.bf16 %v38, %v37
  %v53 = vpack.c.bf16 %v40, %v39
  %v54 = vpack.c.bf16 %v42, %v41
  %v55 = vpack.c.bf16 %v44, %v43
  %v56 = vpack.c.bf16 %v46, %v45
  %v57 = vpack.c.bf16 %v48, %v47
  %v58 = vpack.c.bf16 %v50, %v49
  %v59 = vld [vmem:[%s2] sm:$0xf]
  %v60 = vld [vmem:[%s2 + $0x4] sm:$0xf]
  %v61 = vld [vmem:[%s1] sm:$0xff]
  %v62 = vld [vmem:[%s1 + $0x8] sm:$0xff]
  %v63 = vld [vmem:[%s1 + $0x10] sm:$0xff]
  %v64 = vld [vmem:[%s1 + $0x18] sm:$0xff]
  %v65 = vld [vmem:[%s1 + $0x20] sm:$0xff]
  %v66 = vld [vmem:[%s1 + $0x28] sm:$0xff]
  %v67 = vld [vmem:[%s1 + $0x30] sm:$0xff]
  %v68 = vld [vmem:[%s1 + $0x38] sm:$0xff]
  %v69 = vld [vmem:[%s1 + $0x40] sm:$0xff]
  %v70 = vld [vmem:[%s1 + $0x48] sm:$0xff]
  %v71 = vld [vmem:[%s1 + $0x50] sm:$0xff]
  %v72 = vld [vmem:[%s1 + $0x58] sm:$0xff]
  %v73 = vld [vmem:[%s1 + $0x60] sm:$0xff]
  %v74 = vld [vmem:[%s1 + $0x68] sm:$0xff]
  %v75 = vld [vmem:[%s1 + $0x70] sm:$0xff]
  %v76 = vld [vmem:[%s1 + $0x78] sm:$0xff]
  %v77 = vpack.c.bf16 %v62, %v61
  %v78 = vpack.c.bf16 %v64, %v63
  %v79 = vpack.c.bf16 %v66, %v65
  %v80 = vpack.c.bf16 %v68, %v67
  %v81 = vpack.c.bf16 %v70, %v69
  %v82 = vpack.c.bf16 %v72, %v71
  %v83 = vpack.c.bf16 %v74, %v73
  %v84 = vpack.c.bf16 %v76, %v75
  %v85 = vld [vmem:[%s3] sm:$0x3]
  %vm86 = vcmask 31744
  %v88 = vsel %vm86, %v77, 0
  %v91 = vsel %vm86, %v78, 0
  %v94 = vsel %vm86, %v79, 0
  %v97 = vsel %vm86, %v80, 0
  %v100 = vsel %vm86, %v81, 0
  %v103 = vsel %vm86, %v82, 0
  %v106 = vsel %vm86, %v83, 0
  %v109 = vsel %vm86, %v84, 0
  %vm111 = vcmask 1041408
  %v113 = vsel %vm111, %v85, 0
  %115 = vmatprep.subr.bf16.mxu0 0
  %116 = vmatpush1.bf16.msra.mxu0 %v113
  %117 = vmatprep.subr.bf16.mxu0 0
  %118 = vmatpush1.bf16.msra.mxu0 0
  %119 = vmatprep.subr.bf16.mxu0 0
  %120 = vmatpush1.bf16.msra.mxu0 0
  %121 = vmatprep.subr.bf16.mxu0 0
  %122 = vmatpush1.bf16.msra.mxu0 0
  %123 = vmatprep.subr.bf16.mxu0 0
  %124 = vmatpush1.bf16.msra.mxu0 0
  %125 = vmatprep.subr.bf16.mxu0 0
  %126 = vmatpush1.bf16.msra.mxu0 0
  %127 = vmatprep.subr.bf16.mxu0 0
  %128 = vmatpush1.bf16.msra.mxu0 0
  %129 = vmatprep.subr.bf16.mxu0 0
  %130 = vmatpush1.bf16.msra.mxu0 0
  %131 = vmatprep.subr.bf16.mxu0 0
  %132 = vmatpush1.bf16.msra.mxu0 0
  %133 = vmatprep.subr.bf16.mxu0 0
  %134 = vmatpush1.bf16.msra.mxu0 0
  %135 = vmatprep.subr.bf16.mxu0 0
  %136 = vmatpush1.bf16.msra.mxu0 0
  %137 = vmatprep.subr.bf16.mxu0 0
  %138 = vmatpush1.bf16.msra.mxu0 0
  %139 = vmatprep.subr.bf16.mxu0 0
  %140 = vmatpush1.bf16.msra.mxu0 0
  %141 = vmatprep.subr.bf16.mxu0 0
  %142 = vmatpush1.bf16.msra.mxu0 0
  %143 = vmatprep.subr.bf16.mxu0 0
  %144 = vmatpush1.bf16.msra.mxu0 0
  %145 = vmatprep.subr.bf16.mxu0 0
  %146 = vmatpush1.bf16.msra.mxu0 0
  %147 = vmatprep.mubr.bf16.mxu0 0
  %148 = vmatmul.mubr.bf16.gmra.mrb[0].mxu0 %v88
  %v149 = vpop.f32.mrb[0].mxu0
  %v150 = vadd.f32 0.0, %v149
  %v151 = vpop.f32.mrb[0].mxu0
  %v152 = vpop.f32.mrb[0].mxu0
  %v153 = vadd.f32 0.0, %v152
  %v154 = vpop.f32.mrb[0].mxu0
  %155 = vmatprep.mubr.bf16.mxu0 0
  %156 = vmatmul.mubr.bf16.gmra.mrb[0].mxu0 %v91
  %v157 = vpop.f32.mrb[0].mxu0
  %v158 = vadd.f32 0.0, %v157
  %v159 = vpop.f32.mrb[0].mxu0
  %v160 = vpop.f32.mrb[0].mxu0
  %v161 = vadd.f32 0.0, %v160
  %v162 = vpop.f32.mrb[0].mxu0
  %163 = vmatprep.mubr.bf16.mxu0 0
  %164 = vmatmul.mubr.bf16.gmra.mrb[0].mxu0 %v94
  %v165 = vpop.f32.mrb[0].mxu0
  %v166 = vadd.f32 0.0, %v165
  %v167 = vpop.f32.mrb[0].mxu0
  %v168 = vpop.f32.mrb[0].mxu0
  %v169 = vadd.f32 0.0, %v168
  %v170 = vpop.f32.mrb[0].mxu0
  %171 = vmatprep.mubr.bf16.mxu0 0
  %172 = vmatmul.mubr.bf16.gmra.mrb[0].mxu0 %v97
  %v173 = vpop.f32.mrb[0].mxu0
  %v174 = vadd.f32 0.0, %v173
  %v175 = vpop.f32.mrb[0].mxu0
  %v176 = vpop.f32.mrb[0].mxu0
  %v177 = vadd.f32 0.0, %v176
  %v178 = vpop.f32.mrb[0].mxu0
  %179 = vmatprep.mubr.bf16.mxu0 0
  %180 = vmatmul.mubr.bf16.gmra.mrb[0].mxu0 %v100
  %v181 = vpop.f32.mrb[0].mxu0
  %v182 = vadd.f32 0.0, %v181
  %v183 = vpop.f32.mrb[0].mxu0
  %v184 = vpop.f32.mrb[0].mxu0
  %v185 = vadd.f32 0.0, %v184
  %v186 = vpop.f32.mrb[0].mxu0
  %187 = vmatprep.mubr.bf16.mxu0 0
  %188 = vmatmul.mubr.bf16.gmra.mrb[0].mxu0 %v103
  %v189 = vpop.f32.mrb[0].mxu0
  %v190 = vadd.f32 0.0, %v189
  %v191 = vpop.f32.mrb[0].mxu0
  %v192 = vpop.f32.mrb[0].mxu0
  %v193 = vadd.f32 0.0, %v192
  %v194 = vpop.f32.mrb[0].mxu0
  %195 = vmatprep.mubr.bf16.mxu0 0
  %196 = vmatmul.mubr.bf16.gmra.mrb[0].mxu0 %v106
  %v197 = vpop.f32.mrb[0].mxu0
  %v198 = vadd.f32 0.0, %v197
  %v199 = vpop.f32.mrb[0].mxu0
  %v200 = vpop.f32.mrb[0].mxu0
  %v201 = vadd.f32 0.0, %v200
  %v202 = vpop.f32.mrb[0].mxu0
  %203 = vmatprep.mubr.bf16.mxu0 0
  %204 = vmatmul.mubr.bf16.gmra.mrb[0].mxu0 %v109
  %v205 = vpop.f32.mrb[0].mxu0
  %v206 = vadd.f32 0.0, %v205
  %v207 = vpop.f32.mrb[0].mxu0
  %v208 = vpop.f32.mrb[0].mxu0
  %v209 = vadd.f32 0.0, %v208
  %v210 = vpop.f32.mrb[0].mxu0
  %211 = vdwg.mxu0
  %v214 = vunpack.c.l.b16 %v59
  %v215 = vunpack.c.l.b16 %v60
  %v216 = vpack.c.b16 %v215, %v214
  %vm218 = vcmask 130048
  %v220 = vsel %vm218, %v51, 0
  %v223 = vsel %vm218, %v52, 0
  %v226 = vsel %vm218, %v53, 0
  %v229 = vsel %vm218, %v54, 0
  %v232 = vsel %vm218, %v55, 0
  %v235 = vsel %vm218, %v56, 0
  %v238 = vsel %vm218, %v57, 0
  %v241 = vsel %vm218, %v58, 0
  %243 = vmatprep.subr.bf16.mxu0 0
  %244 = vmatpush1.bf16.msra.mxu0 %v216
  %245 = vmatprep.subr.bf16.mxu0 0
  %246 = vmatpush1.bf16.msra.mxu0 0
  %247 = vmatprep.subr.bf16.mxu0 0
  %248 = vmatpush1.bf16.msra.mxu0 0
  %249 = vmatprep.subr.bf16.mxu0 0
  %250 = vmatpush1.bf16.msra.mxu0 0
  %251 = vmatprep.subr.bf16.mxu0 0
  %252 = vmatpush1.bf16.msra.mxu0 0
  %253 = vmatprep.subr.bf16.mxu0 0
  %254 = vmatpush1.bf16.msra.mxu0 0
  %255 = vmatprep.subr.bf16.mxu0 0
  %256 = vmatpush1.bf16.msra.mxu0 0
  %257 = vmatprep.subr.bf16.mxu0 0
  %258 = vmatpush1.bf16.msra.mxu0 0
  %259 = vmatprep.subr.bf16.mxu0 0
  %260 = vmatpush1.bf16.msra.mxu0 0
  %261 = vmatprep.subr.bf16.mxu0 0
  %262 = vmatpush1.bf16.msra.mxu0 0
  %263 = vmatprep.subr.bf16.mxu0 0
  %264 = vmatpush1.bf16.msra.mxu0 0
  %265 = vmatprep.subr.bf16.mxu0 0
  %266 = vmatpush1.bf16.msra.mxu0 0
  %267 = vmatprep.subr.bf16.mxu0 0
  %268 = vmatpush1.bf16.msra.mxu0 0
  %269 = vmatprep.subr.bf16.mxu0 0
  %270 = vmatpush1.bf16.msra.mxu0 0
  %271 = vmatprep.subr.bf16.mxu0 0
  %272 = vmatpush1.bf16.msra.mxu0 0
  %273 = vmatprep.subr.bf16.mxu0 0
  %274 = vmatpush1.bf16.msra.mxu0 0
  %275 = vmatprep.mubr.bf16.mxu0 0
  %276 = vmatmul.mubr.bf16.gmra.mrb[0].mxu0 %v220
  %v277 = vpop.f32.mrb[0].mxu0
  %v278 = vadd.f32 %v150, %v277
  %v279 = vpop.f32.mrb[0].mxu0
  %v280 = vpop.f32.mrb[0].mxu0
  %v281 = vadd.f32 %v153, %v280
  %v282 = vpop.f32.mrb[0].mxu0
  %283 = vmatprep.mubr.bf16.mxu0 0
  %284 = vmatmul.mubr.bf16.gmra.mrb[0].mxu0 %v223
  %v285 = vpop.f32.mrb[0].mxu0
  %v286 = vadd.f32 %v158, %v285
  %v287 = vpop.f32.mrb[0].mxu0
  %v288 = vpop.f32.mrb[0].mxu0
  %v289 = vadd.f32 %v161, %v288
  %v290 = vpop.f32.mrb[0].mxu0
  %291 = vmatprep.mubr.bf16.mxu0 0
  %292 = vmatmul.mubr.bf16.gmra.mrb[0].mxu0 %v226
  %v293 = vpop.f32.mrb[0].mxu0
  %v294 = vadd.f32 %v166, %v293
  %v295 = vpop.f32.mrb[0].mxu0
  %v296 = vpop.f32.mrb[0].mxu0
  %v297 = vadd.f32 %v169, %v296
  %v298 = vpop.f32.mrb[0].mxu0
  %299 = vmatprep.mubr.bf16.mxu0 0
  %300 = vmatmul.mubr.bf16.gmra.mrb[0].mxu0 %v229
  %v301 = vpop.f32.mrb[0].mxu0
  %v302 = vadd.f32 %v174, %v301
  %v303 = vpop.f32.mrb[0].mxu0
  %v304 = vpop.f32.mrb[0].mxu0
  %v305 = vadd.f32 %v177, %v304
  %v306 = vpop.f32.mrb[0].mxu0
  %307 = vmatprep.mubr.bf16.mxu0 0
  %308 = vmatmul.mubr.bf16.gmra.mrb[0].mxu0 %v232
  %v309 = vpop.f32.mrb[0].mxu0
  %v310 = vadd.f32 %v182, %v309
  %v311 = vpop.f32.mrb[0].mxu0
  %v312 = vpop.f32.mrb[0].mxu0
  %v313 = vadd.f32 %v185, %v312
  %v314 = vpop.f32.mrb[0].mxu0
  %315 = vmatprep.mubr.bf16.mxu0 0
  %316 = vmatmul.mubr.bf16.gmra.mrb[0].mxu0 %v235
  %v317 = vpop.f32.mrb[0].mxu0
  %v318 = vadd.f32 %v190, %v317
  %v319 = vpop.f32.mrb[0].mxu0
  %v320 = vpop.f32.mrb[0].mxu0
  %v321 = vadd.f32 %v193, %v320
  %v322 = vpop.f32.mrb[0].mxu0
  %323 = vmatprep.mubr.bf16.mxu0 0
  %324 = vmatmul.mubr.bf16.gmra.mrb[0].mxu0 %v238
  %v325 = vpop.f32.mrb[0].mxu0
  %v326 = vadd.f32 %v198, %v325
  %v327 = vpop.f32.mrb[0].mxu0
  %v328 = vpop.f32.mrb[0].mxu0
  %v329 = vadd.f32 %v201, %v328
  %v330 = vpop.f32.mrb[0].mxu0
  %331 = vmatprep.mubr.bf16.mxu0 0
  %332 = vmatmul.mubr.bf16.gmra.mrb[0].mxu0 %v241
  %v333 = vpop.f32.mrb[0].mxu0
  %v334 = vadd.f32 %v206, %v333
  %v335 = vpop.f32.mrb[0].mxu0
  %v336 = vpop.f32.mrb[0].mxu0
  %v337 = vadd.f32 %v209, %v336
  %v338 = vpop.f32.mrb[0].mxu0
  %339 = vdwg.mxu0
  %v340 = vld [vmem:[%s4] sm:$0x1]
  %v342 = vlaneseq
  %v343 = vshrl.u32 %v342, 7
  %v344 = vsub.s32 0, %v343
  %v345 = vrot.slane %v340, %v344
  %v347 = vadd.f32 %v278, %v345
  %v348 = vadd.f32 %v281, %v345
  %v349 = vadd.f32 %v286, %v345
  %v350 = vadd.f32 %v289, %v345
  %v351 = vadd.f32 %v294, %v345
  %v352 = vadd.f32 %v297, %v345
  %v353 = vadd.f32 %v302, %v345
  %v354 = vadd.f32 %v305, %v345
  %v355 = vadd.f32 %v310, %v345
  %v356 = vadd.f32 %v313, %v345
  %v357 = vadd.f32 %v318, %v345
  %v358 = vadd.f32 %v321, %v345
  %v359 = vadd.f32 %v326, %v345
  %v360 = vadd.f32 %v329, %v345
  %v361 = vadd.f32 %v334, %v345
  %v362 = vadd.f32 %v337, %v345
  %v363 = vmax.f32 %v347, 0.0
  %v364 = vmax.f32 %v348, 0.0
  %v365 = vmax.f32 %v349, 0.0
  %v366 = vmax.f32 %v350, 0.0
  %v367 = vmax.f32 %v351, 0.0
  %v368 = vmax.f32 %v352, 0.0
  %v369 = vmax.f32 %v353, 0.0
  %v370 = vmax.f32 %v354, 0.0
  %v371 = vmax.f32 %v355, 0.0
  %v372 = vmax.f32 %v356, 0.0
  %v373 = vmax.f32 %v357, 0.0
  %v374 = vmax.f32 %v358, 0.0
  %v375 = vmax.f32 %v359, 0.0
  %v376 = vmax.f32 %v360, 0.0
  %v377 = vmax.f32 %v361, 0.0
  %v378 = vmax.f32 %v362, 0.0
  %v379 = vpack.c.bf16 %v364, %v363
  %v380 = vpack.c.bf16 %v366, %v365
  %v381 = vpack.c.bf16 %v368, %v367
  %v382 = vpack.c.bf16 %v370, %v369
  %v383 = vpack.c.bf16 %v372, %v371
  %v384 = vpack.c.bf16 %v374, %v373
  %v385 = vpack.c.bf16 %v376, %v375
  %v386 = vpack.c.bf16 %v378, %v377
  %v387 = vld [vmem:[%s5] sm:$0xf]
  %v388 = vld [vmem:[%s5 + $0x4] sm:$0xf]
  %v389 = vld [vmem:[%s5 + $0x8] sm:$0xf]
  %v390 = vld [vmem:[%s5 + $0xc] sm:$0xf]
  %v391 = vld [vmem:[%s5 + $0x10] sm:$0xf]
  %v392 = vld [vmem:[%s5 + $0x14] sm:$0xf]
  %v393 = vld [vmem:[%s5 + $0x18] sm:$0xf]
  %v394 = vld [vmem:[%s5 + $0x1c] sm:$0xf]
  %v395 = vld [vmem:[%s6] sm:$0x1]
  %v397 = vlaneseq
  %v398 = vshrl.u32 %v397, 7
  %v399 = vsub.s32 0, %v398
  %v400 = vrot.slane %v395, %v399
  %v410 = vunpack.c.l.b16 %v387
  %v411 = vunpack.c.l.b16 %v388
  %v412 = vunpack.c.l.b16 %v389
  %v413 = vunpack.c.l.b16 %v390
  %v414 = vunpack.c.l.b16 %v391
  %v415 = vunpack.c.l.b16 %v392
  %v416 = vunpack.c.l.b16 %v393
  %v417 = vunpack.c.l.b16 %v394
  %v418 = vpack.c.b16 %v411, %v410
  %v419 = vpack.c.b16 %v413, %v412
  %v420 = vpack.c.b16 %v415, %v414
  %v421 = vpack.c.b16 %v417, %v416
  %vm426 = vcmask 523264
  %v428 = vsel %vm426, %v379, 0
  %v431 = vsel %vm426, %v380, 0
  %v434 = vsel %vm426, %v381, 0
  %v437 = vsel %vm426, %v382, 0
  %v440 = vsel %vm426, %v383, 0
  %v443 = vsel %vm426, %v384, 0
  %v446 = vsel %vm426, %v385, 0
  %v449 = vsel %vm426, %v386, 0
  %451 = vmatprep.subr.bf16.mxu0 0
  %452 = vmatpush1.bf16.msra.mxu0 %v418
  %453 = vmatprep.subr.bf16.mxu0 0
  %454 = vmatpush1.bf16.msra.mxu0 %v419
  %455 = vmatprep.subr.bf16.mxu0 0
  %456 = vmatpush1.bf16.msra.mxu0 %v420
  %457 = vmatprep.subr.bf16.mxu0 0
  %458 = vmatpush1.bf16.msra.mxu0 %v421
  %459 = vmatprep.subr.bf16.mxu0 0
  %460 = vmatpush1.bf16.msra.mxu0 0
  %461 = vmatprep.subr.bf16.mxu0 0
  %462 = vmatpush1.bf16.msra.mxu0 0
  %463 = vmatprep.subr.bf16.mxu0 0
  %464 = vmatpush1.bf16.msra.mxu0 0
  %465 = vmatprep.subr.bf16.mxu0 0
  %466 = vmatpush1.bf16.msra.mxu0 0
  %467 = vmatprep.subr.bf16.mxu0 0
  %468 = vmatpush1.bf16.msra.mxu0 0
  %469 = vmatprep.subr.bf16.mxu0 0
  %470 = vmatpush1.bf16.msra.mxu0 0
  %471 = vmatprep.subr.bf16.mxu0 0
  %472 = vmatpush1.bf16.msra.mxu0 0
  %473 = vmatprep.subr.bf16.mxu0 0
  %474 = vmatpush1.bf16.msra.mxu0 0
  %475 = vmatprep.subr.bf16.mxu0 0
  %476 = vmatpush1.bf16.msra.mxu0 0
  %477 = vmatprep.subr.bf16.mxu0 0
  %478 = vmatpush1.bf16.msra.mxu0 0
  %479 = vmatprep.subr.bf16.mxu0 0
  %480 = vmatpush1.bf16.msra.mxu0 0
  %481 = vmatprep.subr.bf16.mxu0 0
  %482 = vmatpush1.bf16.msra.mxu0 0
  %483 = vmatprep.mubr.bf16.mxu0 0
  %484 = vmatmul.mubr.bf16.gmra.mrb[0].mxu0 %v428
  %v485 = vpop.f32.mrb[0].mxu0
  %v486 = vadd.f32 %v400, %v485
  %v487 = vpop.f32.mrb[0].mxu0
  %v488 = vpop.f32.mrb[0].mxu0
  %v489 = vadd.f32 %v400, %v488
  %v490 = vpop.f32.mrb[0].mxu0
  %491 = vmatprep.mubr.bf16.mxu0 0
  %492 = vmatmul.mubr.bf16.gmra.mrb[0].mxu0 %v431
  %v493 = vpop.f32.mrb[0].mxu0
  %v494 = vadd.f32 %v400, %v493
  %v495 = vpop.f32.mrb[0].mxu0
  %v496 = vpop.f32.mrb[0].mxu0
  %v497 = vadd.f32 %v400, %v496
  %v498 = vpop.f32.mrb[0].mxu0
  %499 = vmatprep.mubr.bf16.mxu0 0
  %500 = vmatmul.mubr.bf16.gmra.mrb[0].mxu0 %v434
  %v501 = vpop.f32.mrb[0].mxu0
  %v502 = vadd.f32 %v400, %v501
  %v503 = vpop.f32.mrb[0].mxu0
  %v504 = vpop.f32.mrb[0].mxu0
  %v505 = vadd.f32 %v400, %v504
  %v506 = vpop.f32.mrb[0].mxu0
  %507 = vmatprep.mubr.bf16.mxu0 0
  %508 = vmatmul.mubr.bf16.gmra.mrb[0].mxu0 %v437
  %v509 = vpop.f32.mrb[0].mxu0
  %v510 = vadd.f32 %v400, %v509
  %v511 = vpop.f32.mrb[0].mxu0
  %v512 = vpop.f32.mrb[0].mxu0
  %v513 = vadd.f32 %v400, %v512
  %v514 = vpop.f32.mrb[0].mxu0
  %515 = vmatprep.mubr.bf16.mxu0 0
  %516 = vmatmul.mubr.bf16.gmra.mrb[0].mxu0 %v440
  %v517 = vpop.f32.mrb[0].mxu0
  %v518 = vadd.f32 %v400, %v517
  %v519 = vpop.f32.mrb[0].mxu0
  %v520 = vpop.f32.mrb[0].mxu0
  %v521 = vadd.f32 %v400, %v520
  %v522 = vpop.f32.mrb[0].mxu0
  %523 = vmatprep.mubr.bf16.mxu0 0
  %524 = vmatmul.mubr.bf16.gmra.mrb[0].mxu0 %v443
  %v525 = vpop.f32.mrb[0].mxu0
  %v526 = vadd.f32 %v400, %v525
  %v527 = vpop.f32.mrb[0].mxu0
  %v528 = vpop.f32.mrb[0].mxu0
  %v529 = vadd.f32 %v400, %v528
  %v530 = vpop.f32.mrb[0].mxu0
  %531 = vmatprep.mubr.bf16.mxu0 0
  %532 = vmatmul.mubr.bf16.gmra.mrb[0].mxu0 %v446
  %v533 = vpop.f32.mrb[0].mxu0
  %v534 = vadd.f32 %v400, %v533
  %v535 = vpop.f32.mrb[0].mxu0
  %v536 = vpop.f32.mrb[0].mxu0
  %v537 = vadd.f32 %v400, %v536
  %v538 = vpop.f32.mrb[0].mxu0
  %539 = vmatprep.mubr.bf16.mxu0 0
  %540 = vmatmul.mubr.bf16.gmra.mrb[0].mxu0 %v449
  %v541 = vpop.f32.mrb[0].mxu0
  %v542 = vadd.f32 %v400, %v541
  %v543 = vpop.f32.mrb[0].mxu0
  %v544 = vpop.f32.mrb[0].mxu0
  %v545 = vadd.f32 %v400, %v544
  %v546 = vpop.f32.mrb[0].mxu0
  %547 = vdwg.mxu0
  %v548 = vmax.f32 %v486, 0.0
  %v549 = vmax.f32 %v489, 0.0
  %v550 = vmax.f32 %v494, 0.0
  %v551 = vmax.f32 %v497, 0.0
  %v552 = vmax.f32 %v502, 0.0
  %v553 = vmax.f32 %v505, 0.0
  %v554 = vmax.f32 %v510, 0.0
  %v555 = vmax.f32 %v513, 0.0
  %v556 = vmax.f32 %v518, 0.0
  %v557 = vmax.f32 %v521, 0.0
  %v558 = vmax.f32 %v526, 0.0
  %v559 = vmax.f32 %v529, 0.0
  %v560 = vmax.f32 %v534, 0.0
  %v561 = vmax.f32 %v537, 0.0
  %v562 = vmax.f32 %v542, 0.0
  %v563 = vmax.f32 %v545, 0.0
  %v564 = vld [vmem:[%s7] sm:$0x1]
  %v565 = vld [vmem:[#allocation2] sm:$0x1]
  %567 = vset.pattern.permute.xlu0 0
  %568 = vperm.xlu0 %567, %v565
  %v569 = vpop.permute.xlu0 %568
  %v571 = vlaneseq
  %v572 = vshrl.u32 %v571, 7
  %v573 = vsub.s32 0, %v572
  %v574 = vrot.slane %v569, %v573
  %vm575 = vcmask 261120
  %v577 = vsel %vm575, %v564, 0
  %v580 = vsel %vm575, %v548, 0
  %v583 = vsel %vm575, %v549, 0
  %v586 = vsel %vm575, %v550, 0
  %v589 = vsel %vm575, %v551, 0
  %v592 = vsel %vm575, %v552, 0
  %v595 = vsel %vm575, %v553, 0
  %v598 = vsel %vm575, %v554, 0
  %v601 = vsel %vm575, %v555, 0
  %v604 = vsel %vm575, %v556, 0
  %v607 = vsel %vm575, %v557, 0
  %v610 = vsel %vm575, %v558, 0
  %v613 = vsel %vm575, %v559, 0
  %v616 = vsel %vm575, %v560, 0
  %v619 = vsel %vm575, %v561, 0
  %v622 = vsel %vm575, %v562, 0
  %v625 = vsel %vm575, %v563, 0
  %627 = vmatprep.subr.mxu0 0.0
  %628 = vmatpush1.xpose.msra.mxu0 %v580
  %629 = vmatprep.subr.mxu0 0.0
  %630 = vmatpush1.xpose.msra.mxu0 %v583
  %631 = vmatprep.subr.mxu0 0.0
  %632 = vmatpush1.xpose.msra.mxu0 %v586
  %633 = vmatprep.subr.mxu0 0.0
  %634 = vmatpush1.xpose.msra.mxu0 %v589
  %635 = vmatprep.subr.mxu0 0.0
  %636 = vmatpush1.xpose.msra.mxu0 %v592
  %637 = vmatprep.subr.mxu0 0.0
  %638 = vmatpush1.xpose.msra.mxu0 %v595
  %639 = vmatprep.subr.mxu0 0.0
  %640 = vmatpush1.xpose.msra.mxu0 %v598
  %641 = vmatprep.subr.mxu0 0.0
  %642 = vmatpush1.xpose.msra.mxu0 %v601
  %643 = vmatprep.subr.mxu0 0.0
  %644 = vmatpush1.xpose.msra.mxu0 %v604
  %645 = vmatprep.subr.mxu0 0.0
  %646 = vmatpush1.xpose.msra.mxu0 %v607
  %647 = vmatprep.subr.mxu0 0.0
  %648 = vmatpush1.xpose.msra.mxu0 %v610
  %649 = vmatprep.subr.mxu0 0.0
  %650 = vmatpush1.xpose.msra.mxu0 %v613
  %651 = vmatprep.subr.mxu0 0.0
  %652 = vmatpush1.xpose.msra.mxu0 %v616
  %653 = vmatprep.subr.mxu0 0.0
  %654 = vmatpush1.xpose.msra.mxu0 %v619
  %655 = vmatprep.subr.mxu0 0.0
  %656 = vmatpush1.xpose.msra.mxu0 %v622
  %657 = vmatprep.subr.mxu0 0.0
  %658 = vmatpush1.xpose.msra.mxu0 %v625
  %659 = vmatprep.subr.mxu0 0.0
  %660 = vmatpush1.xpose.msra.mxu0 0.0
  %661 = vmatprep.subr.mxu0 0.0
  %662 = vmatpush1.xpose.msra.mxu0 0.0
  %663 = vmatprep.subr.mxu0 0.0
  %664 = vmatpush1.xpose.msra.mxu0 0.0
  %665 = vmatprep.subr.mxu0 0.0
  %666 = vmatpush1.xpose.msra.mxu0 0.0
  %667 = vmatprep.subr.mxu0 0.0
  %668 = vmatpush1.xpose.msra.mxu0 0.0
  %669 = vmatprep.subr.mxu0 0.0
  %670 = vmatpush1.xpose.msra.mxu0 0.0
  %671 = vmatprep.subr.mxu0 0.0
  %672 = vmatpush1.xpose.msra.mxu0 0.0
  %673 = vmatprep.subr.mxu0 0.0
  %674 = vmatpush1.xpose.msra.mxu0 0.0
  %675 = vmatprep.subr.mxu0 0.0
  %676 = vmatpush1.xpose.msra.mxu0 0.0
  %677 = vmatprep.subr.mxu0 0.0
  %678 = vmatpush1.xpose.msra.mxu0 0.0
  %679 = vmatprep.subr.mxu0 0.0
  %680 = vmatpush1.xpose.msra.mxu0 0.0
  %681 = vmatprep.subr.mxu0 0.0
  %682 = vmatpush1.xpose.msra.mxu0 0.0
  %683 = vmatprep.subr.mxu0 0.0
  %684 = vmatpush1.xpose.msra.mxu0 0.0
  %685 = vmatprep.subr.mxu0 0.0
  %686 = vmatpush1.xpose.msra.mxu0 0.0
  %687 = vmatprep.subr.mxu0 0.0
  %688 = vmatpush1.xpose.msra.mxu0 0.0
  %689 = vmatprep.subr.mxu0 0.0
  %690 = vmatpush1.xpose.msra.mxu0 0.0
  %691 = vmatprep.mubr.f32.mxu0 0.0
  %692 = vmatmul.mubr.f32.gmra.mrb[0].mxu0 %v577
  %v693 = vpop.f32.mrb[0].mxu0
  %v694 = vadd.f32 %v574, %v693
  %v695 = vpop.f32.mrb[0].mxu0
  %696 = vdwg.mxu0
  %697 = vst [vmem:[%s9] sm:$0x1] %v694
  // Predicated region
  $region38: #{critic_forward.1} parent=0 // pred_check
    _
  $region39: #{critic_forward.1} parent=0 // pred_check_branch
    %699 = sbr.rel (0) target = $region41
  $region40: #{critic_forward.1} parent=0 // pred_region
    _
  $region41: #{critic_forward.1} parent=0 // pred_fallthru
    _
  // Predicated region
  $region42: #{critic_forward.1} parent=0 // pred_check
    _
  $region43: #{critic_forward.1} parent=0 // pred_check_branch
    %701 = sbr.rel (0) target = $region45
  $region44: #{critic_forward.1} parent=0 // pred_region
    _
  $region45: #{critic_forward.1} parent=0 // pred_fallthru
    _

</llo_original>
